<compile_context>
chip_gen: v6e
topology: v6e:2x2x1
jax: 0.10.0
libtpu: 0.0.40
codegen_flags: <defaults>
</compile_context>

<pallas_src>
import functools

import jax
import jax.numpy as jnp
from jax.experimental import pallas as pl
from jax.experimental.pallas import tpu as pltpu


def _round_up(x, m):
    return ((x + m - 1) // m) * m


def _cdiv(a, b):
    return -(-a // b)


def _int_pow(x, e):
    """x ** e for integer e >= 1 via square-and-multiply (pure VALU)."""
    result = None
    base = x
    while e:
        if e & 1:
            result = base if result is None else result * base
        e >>= 1
        if e:
            base = base * base
    return result


def _abs_pow(x, exp):
    """|x| ** exp.  Small non-negative integer exponents stay on the VPU (square-and-multiply,
    skipping jnp.abs for even exponents); anything else falls back to jnp.power in f32."""
    if float(exp) == float(int(exp)) and 0 <= int(exp) <= 16:
        e = int(exp)
        if e == 0:
            return jnp.ones_like(x)
        base = x if e % 2 == 0 else jnp.abs(x)  # even exponent: x**e == |x|**e, skip the abs
        return _int_pow(base, e)
    return jnp.power(jnp.abs(x).astype(jnp.float32), jnp.float32(exp))


def _attention_map_kernel(x_ref, o_ref, *, exp, method, n_channels, ct, fuse_norm):
    """One (sample-block, spatial-block, channel-tile) grid step.

    x_ref: (nb, ct, thw) input tile.
    o_ref: (nb, thw) f32 output block, resident across the channel ('arbitrary', last) grid axis.
    """
    k = pl.program_id(2)
    last_k = pl.num_programs(2) - 1

    @pl.when(k == 0)
    def _init():
        # |x|**exp >= 0, so 0 is the identity for both the channel max and the channel sum.
        o_ref[...] = jnp.zeros_like(o_ref)

    x = x_ref[...]
    if method == "sum":
        # Accumulate sums in f32 regardless of input dtype.
        x = x.astype(jnp.float32)
    y = _abs_pow(x, exp)  # 'max' stays in the input dtype; partial is upcast after the reduce

    def _accumulate(tile):
        if method == "max":
            part = jnp.max(tile, axis=1).astype(jnp.float32)  # (nb, thw)
            o_ref[...] = jnp.maximum(o_ref[...], part)
        else:  # "sum"
            o_ref[...] = o_ref[...] + jnp.sum(tile, axis=1)    # already f32

    rem = n_channels % ct
    if rem == 0:
        _accumulate(y)
    else:
        # Only the final channel tile carries out-of-range sublanes; mask just that one
        # (static compare against the compile-time remainder).
        @pl.when(k != last_k)
        def _full_tile():
            _accumulate(y)

        @pl.when(k == last_k)
        def _tail_tile():
            ch = jax.lax.broadcasted_iota(jnp.int32, (1, ct, 1), 1)
            _accumulate(jnp.where(ch < rem, y, jnp.zeros_like(y)))

    if fuse_norm:
        @pl.when(k == last_k)
        def _finalize():
            att = o_ref[...]
            # Per-sample L2 norm over the (full, resident) spatial extent.  Runs once per output
            # block (off the hot path), so keep the exact sqrt + divide for reference accuracy.
            norm = jnp.sqrt(jnp.sum(att * att, axis=-1, keepdims=True))
            o_ref[...] = att / (norm + 1e-16)


def _vmem_capacity():
    try:
        return int(pltpu.get_tpu_info().vmem_capacity_bytes)
    except Exception:
        return 64 * 1024 * 1024  # conservative (v7x-sized) fallback


def _pick_ct(C, ch_mult, max_ct):
    """Channel tile: <= max_ct, multiple of ch_mult (or the full C), balanced across tiles."""
    ct = max(ch_mult, (max_ct // ch_mult) * ch_mult)
    ct = min(ct, _round_up(C, ch_mult))
    if ct >= C:
        return C  # full channel extent: always a legal block dim, no tail masking needed
    grid_c = _cdiv(C, ct)
    # Re-balance so the tail tile wastes < ch_mult channels of compute (HBM reads are exact anyway).
    return min(ct, _round_up(_cdiv(C, grid_c), ch_mult))


def _choose_tiling(N, C, HW, itemsize):
    ch_mult = 16 if itemsize == 2 else (32 if itemsize == 1 else 8)
    nb = 8 if N >= 8 else N                 # sublane-dense sample block, or the full (small) batch
    grid_n = _cdiv(N, nb)

    # Generation-aware VMEM budget: ~54 MiB on v7x (64 MiB phys), capped at 100 MiB on v5e/v6e.
    vmem_limit = min(int(_vmem_capacity() * 0.85), 100 * 1024 * 1024)
    # Block target: 2x double-buffered input + f32 elementwise temporaries must fit under the limit.
    target = min(16 * 1024 * 1024, vmem_limit // (4 if itemsize >= 4 else 5))

    total_bytes = N * C * HW * itemsize
    fits_full_hw = nb * ch_mult * HW * itemsize <= target
    # v7x megacore: keep >= 2 steps on a parallel axis when there is enough work to matter.
    want_hw_split = grid_n < 2 and HW >= 256 and total_bytes >= 8 * 1024 * 1024

    if fits_full_hw and not want_hw_split:
        thw = HW                            # full spatial extent resident -> fused L2 normalize
        fuse_norm = True
    else:
        if fits_full_hw:                    # splitting only for core parallelism: ~halve the extent
            thw = _round_up(_cdiv(HW, 2), 128)
        else:                               # large feature maps: lane-aligned spatial tiles
            thw = max(128, (target // (nb * ch_mult * itemsize)) // 128 * 128)
            thw = min(thw, _round_up(HW, 128))
        fuse_norm = False

    ct = _pick_ct(C, ch_mult, target // max(1, nb * thw * itemsize))
    return nb, ct, thw, fuse_norm, vmem_limit


def attention_map(fea_maps, exp=1, method="max"):
    """fea_maps: (N, C, H, W) -> (N, H, W), matching the PyTorch AttentionMap module."""
    if method not in ("max", "sum"):
        raise ValueError("method is illegal")

    N, C, H, W = fea_maps.shape
    HW = H * W
    x = fea_maps.reshape(N, C, HW)
    itemsize = jnp.dtype(x.dtype).itemsize

    nb, ct, thw, fuse_norm, vmem_limit = _choose_tiling(N, C, HW, itemsize)
    grid = (_cdiv(N, nb), _cdiv(HW, thw), _cdiv(C, ct))

    kernel = functools.partial(
        _attention_map_kernel, exp=exp, method=method,
        n_channels=C, ct=ct, fuse_norm=fuse_norm)

    att = pl.pallas_call(
        kernel,
        out_shape=jax.ShapeDtypeStruct((N, HW), jnp.float32),
        grid_spec=pltpu.PrefetchScalarGridSpec(
            num_scalar_prefetch=0,
            grid=grid,
            in_specs=[pl.BlockSpec((nb, ct, thw), lambda n, h, k: (n, k, h))],
            out_specs=pl.BlockSpec((nb, thw), lambda n, h, k: (n, h)),
        ),
        compiler_params=pltpu.CompilerParams(
            dimension_semantics=("parallel", "parallel", "arbitrary"),
            vmem_limit_bytes=vmem_limit,
        ),
    )(x)

    if not fuse_norm:
        # Spatial-tiled path: the per-sample L2 norm needs the full H*W, so normalize the small
        # (N, H*W) channel-reduced map as a cheap XLA epilogue (traffic ~2/C of the kernel's read).
        norm = jnp.sqrt(jnp.sum(att * att, axis=-1, keepdims=True))
        att = att / (norm + 1e-16)

    out = att.reshape(N, H, W)
    if jnp.issubdtype(fea_maps.dtype, jnp.floating):
        out = out.astype(fea_maps.dtype)
    return out


def _reference(fea_maps, exp=1, method="max"):
    x = jnp.abs(fea_maps.astype(jnp.float32)) ** exp
    att = jnp.max(x, axis=1) if method == "max" else jnp.sum(x, axis=1)
    N, H, W = att.shape
    flat = att.reshape(N, -1)
    norm = jnp.sqrt(jnp.sum(flat * flat, axis=1, keepdims=True))
    return (flat / (norm + 1e-16)).reshape(N, H, W)


if __name__ == "__main__":
    key = jax.random.PRNGKey(0)
    N, C, H, W = 2, 4, 16, 16
    fea_maps = jax.random.normal(key, (N, C, H, W), dtype=jnp.float32)

    # Module defaults: method='max', exp=1.
    out = jax.block_until_ready(attention_map(fea_maps, exp=1, method="max"))
    ref = _reference(fea_maps, exp=1, method="max")
    assert out.shape == (N, H, W)
    assert jnp.allclose(out, ref, atol=1e-5, rtol=1e-5)

    # method='sum' with integer exp=2 (square-and-multiply / skip-abs path, f32 accumulation).
    out2 = jax.block_until_ready(attention_map(fea_maps, exp=2, method="sum"))
    ref2 = _reference(fea_maps, exp=2, method="sum")
    assert jnp.allclose(out2, ref2, atol=1e-5, rtol=1e-5)

    print("KERNEL_OK")
</pallas_src>

<mosaic_0001>
module attributes {stable_mosaic.version = 11 : i64} {
  func.func @_attention_map_kernel(%arg0: i32, %arg1: i32, %arg2: i32, %arg3: memref<2x4x256xf32, #tpu.memory_space<vmem>>, %arg4: memref<2x256xf32, #tpu.memory_space<vmem>>) attributes {dimension_semantics = [#tpu.dimension_semantics<parallel>, #tpu.dimension_semantics<parallel>, #tpu.dimension_semantics<arbitrary>], iteration_bounds = array<i64: 1, 1, 1>, scalar_prefetch = 0 : i64, scratch_operands = 0 : i64, tpu.core_type = #tpu.core_type<tc>, window_params = [{transform_indices = @transform_0, window_bounds = array<i64: 2, 4, 256>}, {transform_indices = @transform_1, window_bounds = array<i64: 2, 256>}]} {
    %c0_i32 = arith.constant 0 : i32
    %0 = arith.cmpi eq, %arg2, %c0_i32 : i32
    %1 = arith.extui %0 : i1 to i32
    %c0_i32_0 = arith.constant 0 : i32
    %2 = arith.cmpi ne, %1, %c0_i32_0 : i32
    scf.if %2 {
      %cst_9 = arith.constant 0.000000e+00 : f32
      %12 = vector.broadcast %cst_9 : f32 to vector<2x256xf32>
      %c0_10 = arith.constant 0 : index
      %c0_11 = arith.constant 0 : index
      %13 = vector.load %arg4[%c0_10, %c0_11] : memref<2x256xf32, #tpu.memory_space<vmem>>, vector<2x256xf32>
      tpu.vector_store %arg4[%c0_10, %c0_11], %12 {strides = array<i32>} : memref<2x256xf32, #tpu.memory_space<vmem>>, vector<2x256xf32>,
    } else {
    }
    %c0 = arith.constant 0 : index
    %c0_1 = arith.constant 0 : index
    %c0_2 = arith.constant 0 : index
    %3 = vector.load %arg3[%c0, %c0_1, %c0_2] : memref<2x4x256xf32, #tpu.memory_space<vmem>>, vector<2x4x256xf32>
    %4 = math.absf %3 : vector<2x4x256xf32>
    %cst = arith.constant dense<0xFF800000> : vector<2x256xf32>
    %5 = vector.multi_reduction <maximumf>, %4, %cst [1] : vector<2x4x256xf32> to vector<2x256xf32>
    %c0_3 = arith.constant 0 : index
    %c0_4 = arith.constant 0 : index
    %6 = vector.load %arg4[%c0_3, %c0_4] : memref<2x256xf32, #tpu.memory_space<vmem>>, vector<2x256xf32>
    %7 = arith.maximumf %6, %5 : vector<2x256xf32>
    %c0_5 = arith.constant 0 : index
    %c0_6 = arith.constant 0 : index
    %8 = vector.load %arg4[%c0_5, %c0_6] : memref<2x256xf32, #tpu.memory_space<vmem>>, vector<2x256xf32>
    tpu.vector_store %arg4[%c0_5, %c0_6], %7 {strides = array<i32>} : memref<2x256xf32, #tpu.memory_space<vmem>>, vector<2x256xf32>,
    %c0_i32_7 = arith.constant 0 : i32
    %9 = arith.cmpi eq, %arg2, %c0_i32_7 : i32
    %10 = arith.extui %9 : i1 to i32
    %c0_i32_8 = arith.constant 0 : i32
    %11 = arith.cmpi ne, %10, %c0_i32_8 : i32
    scf.if %11 {
      %c0_9 = arith.constant 0 : index
      %c0_10 = arith.constant 0 : index
      %12 = vector.load %arg4[%c0_9, %c0_10] : memref<2x256xf32, #tpu.memory_space<vmem>>, vector<2x256xf32>
      %13 = arith.mulf %12, %12 : vector<2x256xf32>
      %cst_11 = arith.constant dense<0.000000e+00> : vector<2xf32>
      %14 = vector.multi_reduction <add>, %13, %cst_11 [1] : vector<2x256xf32> to vector<2xf32>
      %15 = vector.shape_cast %14 : vector<2xf32> to vector<2x1xf32>
      %16 = math.sqrt %15 : vector<2x1xf32>
      %cst_12 = arith.constant 1.000000e-16 : f32
      %17 = vector.broadcast %cst_12 : f32 to vector<2x1xf32>
      %18 = arith.addf %16, %17 : vector<2x1xf32>
      %19 = vector.broadcast %18 : vector<2x1xf32> to vector<2x256xf32>
      %20 = arith.divf %12, %19 : vector<2x256xf32>
      %c0_13 = arith.constant 0 : index
      %c0_14 = arith.constant 0 : index
      %21 = vector.load %arg4[%c0_13, %c0_14] : memref<2x256xf32, #tpu.memory_space<vmem>>, vector<2x256xf32>
      tpu.vector_store %arg4[%c0_13, %c0_14], %20 {strides = array<i32>} : memref<2x256xf32, #tpu.memory_space<vmem>>, vector<2x256xf32>,
    } else {
    }
    return
  }
  func.func @transform_0(%arg0: i32, %arg1: i32, %arg2: i32) -> (i32, i32, i32) {
    %c0_i32 = arith.constant 0 : i32
    return %arg0, %arg2, %arg1 : i32, i32, i32
  }
  func.func @transform_1(%arg0: i32, %arg1: i32, %arg2: i32) -> (i32, i32) {
    %c0_i32 = arith.constant 0 : i32
    return %arg0, %arg1 : i32, i32
  }
}

</mosaic_0001>

<llo_original>
// kernel: tpu_custom_call.1
$region0: #{tpu_custom_call.1}
  #allocation0 [shape = 'u32[]', space=smem, size = 0x4, offset = 0x4, fixed_abs, tag = 'smem constant byte address 0x4 - core index']
  #allocation1 [shape = 'u32[144,128]{1,0:T(1,128)}', space=vmem, size = 0x12000, scoped, tag = 'internal scratch']
  %s0 = inlined_call_operand.hbm [shape: f32[2,4,256], index: 0, kind: input, shape index: {}]
  %s1 = inlined_call_operand.hbm [shape: f32[2,256], index: 1, kind: output, shape index: {}]
  %s2 = sld [smem:[#allocation0]]
  $region26: #{tpu_custom_call.1} parent=0
    _
  %s4 = ssub.s32 1, %s2
  %s5 = scalar_select 0, %s4, %s2
  $region1: #{tpu_custom_call.1} parent=0
    #allocation2 [shape = 'u8[8192]{0}', space=vmem, size = 0x2000, scoped, tag = 'input window, operand 0, single buffered']
    #allocation3 [shape = 's32[1]{0}', space=sflag, size = 0x4, scoped, tag = 'scoped memory for tpu_custom_call.1']
    #allocation4 [shape = 's32[1]{0}', space=sflag, size = 0x4, scoped, tag = 'scoped memory for tpu_custom_call.1']
    #allocation5 [shape = 'u8[2048]{0}', space=vmem, size = 0x800, scoped, tag = 'output window, operand 0, single buffered']
    %6 = vsyncpa [#allocation3], 0
    %7 = vsyncpa [#allocation4], 0
    // Predicated region
    $region2: #{tpu_custom_call.1} parent=1 // pred_check
      _
    $region3: #{tpu_custom_call.1} parent=1 // pred_check_branch
      %9 = sbr.rel (0) target = $region5
    $region4: #{tpu_custom_call.1} parent=1 // pred_region
      %s11 = ssub.s32 256, 256
      %12 = vsyncadd [#allocation3], %s11
      %s13 = sshll.u32 [#allocation2], 4
      %s14 = int_to_ptr.vmem [resolvable:$true] %s13
      %19 = dma.hbm_to_vmem [thread:$0]  %s0, 256, %s14, [#allocation3], 128, 128, 8
    $region5: #{tpu_custom_call.1} parent=1 // pred_fallthru
      _
    // Predicated region
    $region6: #{tpu_custom_call.1} parent=1 // pred_check
      _
    $region7: #{tpu_custom_call.1} parent=1 // pred_check_branch
      %21 = sbr.rel (0) target = $region9
    $region8: #{tpu_custom_call.1} parent=1 // pred_region
      %22 = dma.done [#allocation3], 256
    $region9: #{tpu_custom_call.1} parent=1 // pred_fallthru
      _
    %p23 = scmp.eq.s32.totalorder 0, 0
    // Predicated region
    $region10: #{tpu_custom_call.1} parent=1 // pred_check
      %p24 = pneg %p23
    $region11: #{tpu_custom_call.1} parent=1 // pred_check_branch
      %26 = sbr.rel (%p24) target = $region13
    $region12: #{tpu_custom_call.1} parent=1 // pred_region
      %27 = vst [vmem:[#allocation5] sm:$0xf] 0.0
    $region13: #{tpu_custom_call.1} parent=1 // pred_fallthru
      _
    %v28 = vld [vmem:[#allocation2] sm:$0xff]
    %v29 = vld [vmem:[#allocation2 + $0x8] sm:$0xff]
    %v30 = vand.u32 2147483647, %v28
    %v31 = vand.u32 2147483647, %v29
    %v34 = vcombine.high %v30, %v30
    %v35 = vcombine.high %v31, %v31
    %vm38 = vcmask 1043456
    %v39 = vsel %vm38, %v30, -inf
    %v40 = vrot.slane %v39, 4
    %v41 = vmax.f32 %v39, %v40
    %v42 = vrot.slane %v41, 2
    %v43 = vmax.f32 %v41, %v42
    %v44 = vrot.slane %v43, 1
    %v45 = vmax.f32 %v43, %v44
    %v46 = vsel %vm38, %v34, -inf
    %v47 = vrot.slane %v46, 4
    %v48 = vmax.f32 %v46, %v47
    %v49 = vrot.slane %v48, 2
    %v50 = vmax.f32 %v48, %v49
    %v51 = vrot.slane %v50, 1
    %v52 = vmax.f32 %v50, %v51
    %v53 = vsel %vm38, %v31, -inf
    %v54 = vrot.slane %v53, 4
    %v55 = vmax.f32 %v53, %v54
    %v56 = vrot.slane %v55, 2
    %v57 = vmax.f32 %v55, %v56
    %v58 = vrot.slane %v57, 1
    %v59 = vmax.f32 %v57, %v58
    %v60 = vsel %vm38, %v35, -inf
    %v61 = vrot.slane %v60, 4
    %v62 = vmax.f32 %v60, %v61
    %v63 = vrot.slane %v62, 2
    %v64 = vmax.f32 %v62, %v63
    %v65 = vrot.slane %v64, 1
    %v66 = vmax.f32 %v64, %v65
    %v67 = vld [vmem:[#allocation5] sm:$0xf]
    %v72 = vcombine.low %v45, %v52
    %v74 = vunpack.c.l.s4 1983009808
    %v75 = vunpack.c.0.s8 %v74
    %v76 = vlaneseq
    %v77 = vshrl.u32 %v76, 7
    %v78 = vsub.s32 %v75, %v77
    %v79 = vrot.slane %v72, %v78
    %v80 = vcombine.low %v59, %v66
    %v82 = vunpack.c.l.s4 1983009808
    %v83 = vunpack.c.0.s8 %v82
    %v84 = vlaneseq
    %v85 = vshrl.u32 %v84, 7
    %v86 = vsub.s32 %v83, %v85
    %v87 = vrot.slane %v80, %v86
    %vm88 = vcmask 1044484
    %v89 = vsel %vm88, %v79, %v79
    %vm90 = vcmask 1046534
    %v91 = vsel %vm90, %v79, %v89
    %v92 = vrot.slane %v87, 7
    %vm93 = vcmask 1041409
    %v94 = vsel %vm93, %v92, %v91
    %vm95 = vcmask 1043459
    %v96 = vsel %vm95, %v92, %v94
    %vm97 = vcmask 1045509
    %v98 = vsel %vm97, %v92, %v96
    %vm99 = vcmask 1047559
    %v100 = vsel %vm99, %v92, %v98
    %v102 = vmax.f32 %v67, %v100
    %103 = vst [vmem:[#allocation5] sm:$0xf] %v102
    // Predicated region
    $region14: #{tpu_custom_call.1} parent=1 // pred_check
      %p104 = pneg %p23
    $region15: #{tpu_custom_call.1} parent=1 // pred_check_branch
      %106 = sbr.rel (%p104) target = $region17
    $region16: #{tpu_custom_call.1} parent=1 // pred_region
      %v107 = vld [vmem:[#allocation5] sm:$0xf]
      %v108 = vmul.f32 %v107, %v107
      %v111 = vunpack.c.l.s4 1983009808
      %v112 = vunpack.c.0.s8 %v111
      %v113 = vlaneseq
      %v114 = vshrl.u32 %v113, 7
      %v115 = vsub.s32 %v112, %v114
      %v116 = vrot.slane %v108, %v115
      %v117 = vcombine.high %v116, %v116
      %vm120 = vcmask 1041408
      %v121 = vsel %vm120, %v116, 0.0
      %v122 = vsel %vm120, %v117, 0.0
      %v123 = vadd.f32 %v121, %v122
      %124 = vadd.xlane.f32.xlu0 %v123
      %v125 = vpop.xlane.xlu0 %124
      %v126 = vrsqrt.pop %v125
      %v127 = vmul.f32 %v125, %v126
      %vm128 = vcmp.eq.f32.partialorder %v125, inf
      %v129 = vsel %vm128, %v125, %v127
      %vm130 = vcmp.eq.f32.partialorder %v125, 0.0
      %v131 = vand.u32 %v125, 2147483648
      %v132 = vsel %vm130, %v131, %v129
      %v133 = vadd.f32 %v132, 1e-16
      %v136 = vunpack.c.l.s4 269488144
      %v137 = vunpack.c.0.s8 %v136
      %v138 = vlaneseq
      %v139 = vshrl.u32 %v138, 7
      %v140 = vsub.s32 %v137, %v139
      %v141 = vrot.slane %v133, %v140
      %v143 = vrcp.pop %v141
      %v144 = vmul.f32 %v107, %v143
      %145 = vst [vmem:[#allocation5] sm:$0xf] %v144
    $region17: #{tpu_custom_call.1} parent=1 // pred_fallthru
      _
    // Predicated region
    $region18: #{tpu_custom_call.1} parent=1 // pred_check
      _
    $region19: #{tpu_custom_call.1} parent=1 // pred_check_branch
      %147 = sbr.rel (0) target = $region21
    $region20: #{tpu_custom_call.1} parent=1 // pred_region
      %s149 = ssub.s32 64, 64
      %150 = vsyncadd [#allocation4], %s149
      %s152 = sshll.u32 [#allocation5], 4
      %s153 = int_to_ptr.vmem [resolvable:$true] %s152
      %155 = dma.vmem_to_hbm [thread:$0]  %s153, 64, %s1, [#allocation4]
    $region21: #{tpu_custom_call.1} parent=1 // pred_fallthru
      _
    // Predicated region
    $region22: #{tpu_custom_call.1} parent=1 // pred_check
      _
    $region23: #{tpu_custom_call.1} parent=1 // pred_check_branch
      %157 = sbr.rel (0) target = $region25
    $region24: #{tpu_custom_call.1} parent=1 // pred_region
      %158 = dma.done [#allocation4], 64
    $region25: #{tpu_custom_call.1} parent=1 // pred_fallthru
      _
    %159 = vsyncpa [#allocation3], 1
    %160 = vsyncpa [#allocation4], 1

</llo_original>
